<compile_context>
chip_gen: v5e
topology: v5e:2x2
jax: 0.10.0
libtpu: 0.0.40
codegen_flags: <defaults>
</compile_context>

<pallas_src>
import jax
import jax.numpy as jnp
from jax import lax
from jax.experimental import pallas as pl
from jax.experimental.pallas import tpu as pltpu
import numpy as np

# ---- small config (consistent with LSHNConfig semantics) ----
B = 2            # batch
S = 8            # temporal sequence length
E = 32           # embedding_dim (== H so W_in fits the packed weight slab)
H = 32           # hidden_dim
P = 64           # pattern_dim
NH = 4           # num_heads (H % NH == 0)
HD = H // NH     # head_dim = 8
T = S + 1        # combined sequence (query token + temporal tokens)
BT = B * T       # 18 valid rows
BTP = 32         # padded rows (sublane-friendly, = per-head lane block width)
FF = 2 * H       # transformer dim_feedforward = hidden_dim * 2
EPS = 1e-5       # LayerNorm eps (PyTorch default)
NEG = -1e30

# ---- packed weight slab [H, W_LANES] (packed ONCE on host) ----
WQKV_OFF = 0            # Wq|Wk|Wv, 96 lanes (Wq pre-scaled by 1/sqrt(HD))
WO_OFF   = 96           # Wo, 32 lanes
WIN_OFF  = 128          # W_in, 32 lanes
WFF1_OFF = 160          # W_ff1, 64 lanes
WFF2T_OFF = 224         # W_ff2^T, 64 lanes
WPAT_OFF = 288          # W_pat, 64 lanes
W_LANES  = 352

# ---- packed constant slab [NH*BTP=128, C_LANES] ----
SM_OFF = 0              # head-stack mask [128, H]: row h*BTP+j, lane d -> (d//HD == h)
QM_OFF = 32             # query-row ReLU mask, rows 0:BTP, [BTP, H]
AB_OFF = 64             # rows 0:BTP -> additive attention bias [BTP, NH*BTP]
                        # rows 32..  -> bias / layernorm vectors (one per row)
C_LANES = AB_OFF + NH * BTP   # 192

R_B_IN, R_B_QKV, R_B_O = 32, 33, 34
R_LN1_W, R_LN1_B = 35, 36
R_FF1_B, R_FF2_B = 37, 38
R_LN2_W, R_LN2_B = 39, 40
R_B_PAT, R_LNF_W, R_LNF_B = 41, 42, 43


def _layernorm(x, w, b):
    # single-pass: the two lane reductions are independent and can overlap (XLU)
    inv_d = 1.0 / x.shape[-1]
    mean = jnp.sum(x, axis=-1, keepdims=True) * inv_d
    ex2 = jnp.sum(x * x, axis=-1, keepdims=True) * inv_d
    var = ex2 - mean * mean
    return (x - mean) * lax.rsqrt(var + EPS) * w + b


def encoder_kernel(x_ref, w_ref, c_ref, out_ref):
    # ---- static, lane-aligned parameter / constant views ----
    w_qkv = w_ref[:, WQKV_OFF:WQKV_OFF + 3 * H]
    w_o = w_ref[:, WO_OFF:WO_OFF + H]
    w_in = w_ref[:, WIN_OFF:WIN_OFF + H]
    w_ff1 = w_ref[:, WFF1_OFF:WFF1_OFF + FF]
    w_ff2t = w_ref[:, WFF2T_OFF:WFF2T_OFF + FF]      # [H, FF] = W_ff2^T
    w_pat = w_ref[:, WPAT_OFF:WPAT_OFF + P]

    sm = c_ref[:, SM_OFF:SM_OFF + H]                 # [NH*BTP, H] head-stack mask
    qm = c_ref[0:BTP, QM_OFF:QM_OFF + H]             # [BTP, H]   relu-on-query-rows mask
    attn_bias = c_ref[0:BTP, AB_OFF:AB_OFF + NH * BTP]  # [BTP, NH*BTP]

    def bias(row, width):
        return c_ref[row:row + 1, AB_OFF:AB_OFF + width]

    b_in = bias(R_B_IN, H)
    b_qkv = bias(R_B_QKV, 3 * H)
    b_o = bias(R_B_O, H)
    ln1_w, ln1_b = bias(R_LN1_W, H), bias(R_LN1_B, H)
    b_ff1, b_ff2 = bias(R_FF1_B, FF), bias(R_FF2_B, H)
    ln2_w, ln2_b = bias(R_LN2_W, H), bias(R_LN2_B, H)
    b_pat = bias(R_B_PAT, P)
    lnf_w, lnf_b = bias(R_LNF_W, P), bias(R_LNF_B, P)

    x_in = x_ref[...]                                # [BTP, E]

    # input_projection on all rows; ReLU only on the B query rows (constant mask)
    h = jnp.dot(x_in, w_in, preferred_element_type=jnp.float32) + b_in
    h = jnp.where(qm > 0.5, jnp.maximum(h, 0.0), h)

    # ---- TransformerEncoderLayer (post-norm, relu, eval) ----
    # fused QKV projection (softmax scale already folded into Wq / b_q)
    qkv = jnp.dot(h, w_qkv, preferred_element_type=jnp.float32) + b_qkv   # [BTP, 3H]
    q = qkv[:, 0:H]
    k = qkv[:, H:2 * H]
    v = qkv[:, 2 * H:3 * H]

    # head-stacked masked K / V: row h*BTP + j holds token j masked to head h's lanes
    k_st = jnp.concatenate([k] * NH, axis=0) * sm    # [NH*BTP, H]
    v_st = jnp.concatenate([v] * NH, axis=0) * sm    # [NH*BTP, H]

    # all-head scores in a single MXU pass; lanes [h*BTP, (h+1)*BTP) hold head h
    s = lax.dot_general(q, k_st, (((1,), (1,)), ((), ())),
                        preferred_element_type=jnp.float32)               # [BTP, NH*BTP]
    s = s + attn_bias

    # one softmax chain: global row max is valid for per-head softmax (shift cancels)
    e = jnp.exp(s - jnp.max(s, axis=-1, keepdims=True))                   # masked lanes -> 0

    # numerator and per-head denominator as two matmuls; the denominator lands
    # directly in the output-lane layout (lane d gets head d//HD's sum), so the
    # per-head normalization is a single reciprocal-multiply.
    attn_num = jnp.dot(e, v_st, preferred_element_type=jnp.float32)       # [BTP, H]
    attn_den = jnp.dot(e, sm, preferred_element_type=jnp.float32)         # [BTP, H]
    attn = attn_num * pl.reciprocal(attn_den, approx=True)

    attn = jnp.dot(attn, w_o, preferred_element_type=jnp.float32) + b_o
    x = _layernorm(h + attn, ln1_w, ln1_b)

    ff = jnp.maximum(jnp.dot(x, w_ff1, preferred_element_type=jnp.float32) + b_ff1, 0.0)
    ff = lax.dot_general(ff, w_ff2t, (((1,), (1,)), ((), ())),
                         preferred_element_type=jnp.float32) + b_ff2
    x = _layernorm(x + ff, ln2_w, ln2_b)

    # encoded[:, 0, :] == the first B rows (contiguous sublane slice)
    x0 = x[0:B, :]                                                        # [B, H]
    pat = jnp.dot(x0, w_pat, preferred_element_type=jnp.float32) + b_pat  # [B, P]
    out_ref[...] = _layernorm(pat, lnf_w, lnf_b)
    # TODO(synk): dropout layers are identity (eval mode).


def pack_params(p):
    """Host-side, one-time packing of all weights + constants (numpy)."""
    scale = 1.0 / np.sqrt(HD)

    w = np.zeros((H, W_LANES), np.float32)
    qkv_w = np.asarray(p["qkv_w"], np.float32)
    w[:, WQKV_OFF:WQKV_OFF + H] = qkv_w[:, 0:H] * scale          # fold softmax scale
    w[:, WQKV_OFF + H:WQKV_OFF + 3 * H] = qkv_w[:, H:3 * H]
    w[:, WO_OFF:WO_OFF + H] = np.asarray(p["out_w"], np.float32)
    w[:, WIN_OFF:WIN_OFF + H] = np.asarray(p["w_in"], np.float32)
    w[:, WFF1_OFF:WFF1_OFF + FF] = np.asarray(p["ff1_w"], np.float32)
    w[:, WFF2T_OFF:WFF2T_OFF + FF] = np.asarray(p["ff2_w"], np.float32).T
    w[:, WPAT_OFF:WPAT_OFF + P] = np.asarray(p["w_pat"], np.float32)

    c = np.zeros((NH * BTP, C_LANES), np.float32)

    # head-stack mask (also serves as the per-head softmax-denominator "ones" map)
    for hh in range(NH):
        c[hh * BTP:(hh + 1) * BTP, SM_OFF + hh * HD:SM_OFF + (hh + 1) * HD] = 1.0

    # relu applies only to the query rows
    c[0:B, QM_OFF:QM_OFF + H] = 1.0

    # additive attention bias: a valid row attends only to valid keys of its own batch;
    # padding query rows attend everywhere (finite garbage, never read).
    def blk(r):
        return r if r < B else (r - B) // S
    ab = np.zeros((BTP, NH * BTP), np.float32)
    for i in range(BT):
        for hh in range(NH):
            for j in range(BTP):
                if j >= BT or blk(j) != blk(i):
                    ab[i, hh * BTP + j] = NEG
    c[0:BTP, AB_OFF:AB_OFF + NH * BTP] = ab

    def put(row, vec):
        vec = np.asarray(vec, np.float32).reshape(-1)
        c[row, AB_OFF:AB_OFF + vec.shape[0]] = vec

    put(R_B_IN, p["b_in"])
    qkv_b = np.asarray(p["qkv_b"], np.float32).reshape(-1).copy()
    qkv_b[0:H] *= scale                                           # fold softmax scale
    put(R_B_QKV, qkv_b)
    put(R_B_O, p["out_b"])
    put(R_LN1_W, p["ln1_w"]); put(R_LN1_B, p["ln1_b"])
    put(R_FF1_B, p["ff1_b"]); put(R_FF2_B, p["ff2_b"])
    put(R_LN2_W, p["ln2_w"]); put(R_LN2_B, p["ln2_b"])
    put(R_B_PAT, p["b_pat"])
    put(R_LNF_W, p["lnf_w"]); put(R_LNF_B, p["lnf_b"])

    return jnp.asarray(w), jnp.asarray(c)


@jax.jit
def episodic_memory_encoder(embeddings, temporal_context, w_slab, c_slab):
    # rows = [query_0, query_1, temporal_0 (S rows), temporal_1 (S rows), zero pad]
    x_in = jnp.concatenate(
        [embeddings.astype(jnp.float32),
         temporal_context.reshape(B * S, E).astype(jnp.float32),
         jnp.zeros((BTP - BT, E), jnp.float32)], axis=0)                  # [BTP, E]
    vmem = pl.BlockSpec(memory_space=pltpu.MemorySpace.VMEM)
    # Single program, fully VMEM-resident (~150 KiB total): no grid / tiling needed on
    # any TPU generation.  TODO(synk): for many independent encoder instances per step,
    # add a leading parallel grid axis to use v7x's second TensorCore.
    return pl.pallas_call(
        encoder_kernel,
        out_shape=jax.ShapeDtypeStruct((B, P), jnp.float32),
        in_specs=[vmem, vmem, vmem],
        out_specs=vmem,
    )(x_in, w_slab, c_slab)


# ---- pure-JAX reference (same math) for a sanity check ----
def reference(embeddings, ctx, p):
    hidden = jnp.maximum(embeddings @ p["w_in"] + p["b_in"], 0.0)          # [B, H]
    th = jnp.einsum("bse,eh->bsh", ctx, p["w_in"]) + p["b_in"]             # [B, S, H]
    x = jnp.concatenate([hidden[:, None, :], th], axis=1)                  # [B, T, H]

    qkv = jnp.einsum("bth,hk->btk", x, p["qkv_w"]) + p["qkv_b"]
    q, k, v = qkv[..., :H], qkv[..., H:2 * H], qkv[..., 2 * H:]
    q = q.reshape(B, T, NH, HD).transpose(0, 2, 1, 3)
    k = k.reshape(B, T, NH, HD).transpose(0, 2, 1, 3)
    v = v.reshape(B, T, NH, HD).transpose(0, 2, 1, 3)
    sc = jnp.einsum("bhqd,bhkd->bhqk", q, k) / (HD ** 0.5)
    pr = jax.nn.softmax(sc, axis=-1)
    o = jnp.einsum("bhqk,bhkd->bhqd", pr, v).transpose(0, 2, 1, 3).reshape(B, T, H)
    o = jnp.einsum("bth,hk->btk", o, p["out_w"]) + p["out_b"]

    def ln(y, w, b):
        m = y.mean(-1, keepdims=True)
        var = ((y - m) ** 2).mean(-1, keepdims=True)
        return (y - m) / jnp.sqrt(var + EPS) * w + b

    x = ln(x + o, p["ln1_w"], p["ln1_b"])
    ff = jnp.maximum(jnp.einsum("bth,hk->btk", x, p["ff1_w"]) + p["ff1_b"], 0.0)
    ff = jnp.einsum("btk,kh->bth", ff, p["ff2_w"]) + p["ff2_b"]
    x = ln(x + ff, p["ln2_w"], p["ln2_b"])
    h0 = x[:, 0, :]
    pat = h0 @ p["w_pat"] + p["b_pat"]
    return ln(pat, p["lnf_w"], p["lnf_b"])


def make_params(key):
    ks = jax.random.split(key, 10)
    n = lambda k, shp: (0.02 * jax.random.normal(k, shp)).astype(jnp.float32)
    return {
        "w_in": n(ks[0], (E, H)), "b_in": n(ks[1], (1, H)),
        "qkv_w": n(ks[2], (H, 3 * H)), "qkv_b": n(ks[3], (1, 3 * H)),
        "out_w": n(ks[4], (H, H)), "out_b": n(ks[5], (1, H)),
        "ln1_w": jnp.ones((1, H), jnp.float32), "ln1_b": jnp.zeros((1, H), jnp.float32),
        "ff1_w": n(ks[6], (H, FF)), "ff1_b": n(ks[7], (1, FF)),
        "ff2_w": n(ks[8], (FF, H)), "ff2_b": n(ks[9], (1, H)),
        "ln2_w": jnp.ones((1, H), jnp.float32), "ln2_b": jnp.zeros((1, H), jnp.float32),
        "w_pat": n(jax.random.fold_in(key, 100), (H, P)),
        "b_pat": n(jax.random.fold_in(key, 101), (1, P)),
        "lnf_w": jnp.ones((1, P), jnp.float32), "lnf_b": jnp.zeros((1, P), jnp.float32),
    }


if __name__ == "__main__":
    key = jax.random.PRNGKey(0)
    k_emb, k_ctx, k_par = jax.random.split(key, 3)
    embeddings = jax.random.normal(k_emb, (B, E), dtype=jnp.float32)
    temporal_context = jax.random.normal(k_ctx, (B, S, E), dtype=jnp.float32)
    params = make_params(k_par)

    # one-time, out of the per-call path
    w_slab, c_slab = pack_params(params)

    out = episodic_memory_encoder(embeddings, temporal_context, w_slab, c_slab)
    out = jax.block_until_ready(out)

    ref = jax.block_until_ready(reference(embeddings, temporal_context, params))
    assert out.shape == (B, P)
    np.testing.assert_allclose(np.asarray(out), np.asarray(ref), rtol=2e-3, atol=2e-3)

    print("KERNEL_OK")
</pallas_src>

<mosaic_0001>
module attributes {stable_mosaic.version = 11 : i64} {
  func.func @encoder_kernel(%arg0: memref<32x32xf32, #tpu.memory_space<vmem>>, %arg1: memref<32x352xf32, #tpu.memory_space<vmem>>, %arg2: memref<128x192xf32, #tpu.memory_space<vmem>>, %arg3: memref<2x64xf32, #tpu.memory_space<vmem>>) attributes {dimension_semantics = [], scalar_prefetch = 0 : i64, scratch_operands = 0 : i64, tpu.core_type = #tpu.core_type<tc>} {
    %c0 = arith.constant 0 : index
    %c0_0 = arith.constant 0 : index
    %0 = vector.load %arg1[%c0, %c0_0] : memref<32x352xf32, #tpu.memory_space<vmem>>, vector<32x96xf32>
    %c0_1 = arith.constant 0 : index
    %c96 = arith.constant 96 : index
    %1 = vector.load %arg1[%c0_1, %c96] : memref<32x352xf32, #tpu.memory_space<vmem>>, vector<32x32xf32>
    %c0_2 = arith.constant 0 : index
    %c128 = arith.constant 128 : index
    %2 = vector.load %arg1[%c0_2, %c128] : memref<32x352xf32, #tpu.memory_space<vmem>>, vector<32x32xf32>
    %c0_3 = arith.constant 0 : index
    %c160 = arith.constant 160 : index
    %3 = vector.load %arg1[%c0_3, %c160] : memref<32x352xf32, #tpu.memory_space<vmem>>, vector<32x64xf32>
    %c0_4 = arith.constant 0 : index
    %c224 = arith.constant 224 : index
    %4 = vector.load %arg1[%c0_4, %c224] : memref<32x352xf32, #tpu.memory_space<vmem>>, vector<32x64xf32>
    %c0_5 = arith.constant 0 : index
    %c288 = arith.constant 288 : index
    %5 = vector.load %arg1[%c0_5, %c288] : memref<32x352xf32, #tpu.memory_space<vmem>>, vector<32x64xf32>
    %c0_6 = arith.constant 0 : index
    %c0_7 = arith.constant 0 : index
    %6 = vector.load %arg2[%c0_6, %c0_7] : memref<128x192xf32, #tpu.memory_space<vmem>>, vector<128x32xf32>
    %c0_8 = arith.constant 0 : index
    %c32 = arith.constant 32 : index
    %7 = vector.load %arg2[%c0_8, %c32] : memref<128x192xf32, #tpu.memory_space<vmem>>, vector<32x32xf32>
    %c0_9 = arith.constant 0 : index
    %c64 = arith.constant 64 : index
    %8 = vector.load %arg2[%c0_9, %c64] : memref<128x192xf32, #tpu.memory_space<vmem>>, vector<32x128xf32>
    %c32_10 = arith.constant 32 : index
    %c64_11 = arith.constant 64 : index
    %9 = vector.load %arg2[%c32_10, %c64_11] : memref<128x192xf32, #tpu.memory_space<vmem>>, vector<1x32xf32>
    %c33 = arith.constant 33 : index
    %c64_12 = arith.constant 64 : index
    %10 = vector.load %arg2[%c33, %c64_12] : memref<128x192xf32, #tpu.memory_space<vmem>>, vector<1x96xf32>
    %c34 = arith.constant 34 : index
    %c64_13 = arith.constant 64 : index
    %11 = vector.load %arg2[%c34, %c64_13] : memref<128x192xf32, #tpu.memory_space<vmem>>, vector<1x32xf32>
    %c35 = arith.constant 35 : index
    %c64_14 = arith.constant 64 : index
    %12 = vector.load %arg2[%c35, %c64_14] : memref<128x192xf32, #tpu.memory_space<vmem>>, vector<1x32xf32>
    %c36 = arith.constant 36 : index
    %c64_15 = arith.constant 64 : index
    %13 = vector.load %arg2[%c36, %c64_15] : memref<128x192xf32, #tpu.memory_space<vmem>>, vector<1x32xf32>
    %c37 = arith.constant 37 : index
    %c64_16 = arith.constant 64 : index
    %14 = vector.load %arg2[%c37, %c64_16] : memref<128x192xf32, #tpu.memory_space<vmem>>, vector<1x64xf32>
    %c38 = arith.constant 38 : index
    %c64_17 = arith.constant 64 : index
    %15 = vector.load %arg2[%c38, %c64_17] : memref<128x192xf32, #tpu.memory_space<vmem>>, vector<1x32xf32>
    %c39 = arith.constant 39 : index
    %c64_18 = arith.constant 64 : index
    %16 = vector.load %arg2[%c39, %c64_18] : memref<128x192xf32, #tpu.memory_space<vmem>>, vector<1x32xf32>
    %c40 = arith.constant 40 : index
    %c64_19 = arith.constant 64 : index
    %17 = vector.load %arg2[%c40, %c64_19] : memref<128x192xf32, #tpu.memory_space<vmem>>, vector<1x32xf32>
    %c41 = arith.constant 41 : index
    %c64_20 = arith.constant 64 : index
    %18 = vector.load %arg2[%c41, %c64_20] : memref<128x192xf32, #tpu.memory_space<vmem>>, vector<1x64xf32>
    %c42 = arith.constant 42 : index
    %c64_21 = arith.constant 64 : index
    %19 = vector.load %arg2[%c42, %c64_21] : memref<128x192xf32, #tpu.memory_space<vmem>>, vector<1x64xf32>
    %c43 = arith.constant 43 : index
    %c64_22 = arith.constant 64 : index
    %20 = vector.load %arg2[%c43, %c64_22] : memref<128x192xf32, #tpu.memory_space<vmem>>, vector<1x64xf32>
    %c0_23 = arith.constant 0 : index
    %c0_24 = arith.constant 0 : index
    %21 = vector.load %arg0[%c0_23, %c0_24] : memref<32x32xf32, #tpu.memory_space<vmem>>, vector<32x32xf32>
    %cst = arith.constant dense<0.000000e+00> : vector<32x32xf32>
    %22 = tpu.matmul %21, %2, %cst {dimension_numbers = #tpu.dot_dimension_numbers<[1], [0], [0], [1], [0, 0, 1, 1], [], []>} : vector<32x32xf32>, vector<32x32xf32>, vector<32x32xf32> -> vector<32x32xf32>
    %23 = vector.broadcast %9 : vector<1x32xf32> to vector<32x32xf32>
    %24 = arith.addf %22, %23 : vector<32x32xf32>
    %cst_25 = arith.constant 5.000000e-01 : f32
    %25 = vector.broadcast %cst_25 : f32 to vector<32x32xf32>
    %26 = arith.cmpf ogt, %7, %25 : vector<32x32xf32>
    %cst_26 = arith.constant 0.000000e+00 : f32
    %27 = vector.broadcast %cst_26 : f32 to vector<32x32xf32>
    %28 = arith.maximumf %24, %27 : vector<32x32xf32>
    %29 = arith.select %26, %28, %24 : vector<32x32xi1>, vector<32x32xf32>
    %cst_27 = arith.constant dense<0.000000e+00> : vector<32x96xf32>
    %30 = tpu.matmul %29, %0, %cst_27 {dimension_numbers = #tpu.dot_dimension_numbers<[1], [0], [0], [1], [0, 0, 1, 1], [], []>} : vector<32x32xf32>, vector<32x96xf32>, vector<32x96xf32> -> vector<32x96xf32>
    %31 = vector.broadcast %10 : vector<1x96xf32> to vector<32x96xf32>
    %32 = arith.addf %30, %31 : vector<32x96xf32>
    %33 = vector.extract_strided_slice %32 {offsets = [0, 0], sizes = [32, 32], strides = [1, 1]} : vector<32x96xf32> to vector<32x32xf32>
    %34 = vector.extract_strided_slice %32 {offsets = [0, 32], sizes = [32, 32], strides = [1, 1]} : vector<32x96xf32> to vector<32x32xf32>
    %35 = vector.extract_strided_slice %32 {offsets = [0, 64], sizes = [32, 32], strides = [1, 1]} : vector<32x96xf32> to vector<32x32xf32>
    %36 = tpu.concatenate %34, %34, %34, %34 in 0 : vector<32x32xf32>, vector<32x32xf32>, vector<32x32xf32>, vector<32x32xf32> -> vector<128x32xf32>
    %37 = arith.mulf %36, %6 : vector<128x32xf32>
    %38 = tpu.concatenate %35, %35, %35, %35 in 0 : vector<32x32xf32>, vector<32x32xf32>, vector<32x32xf32>, vector<32x32xf32> -> vector<128x32xf32>
    %39 = arith.mulf %38, %6 : vector<128x32xf32>
    %cst_28 = arith.constant dense<0.000000e+00> : vector<32x128xf32>
    %40 = tpu.matmul %33, %37, %cst_28 {dimension_numbers = #tpu.dot_dimension_numbers<[1], [1], [0], [0], [0, 0, 1, 0], [], []>} : vector<32x32xf32>, vector<128x32xf32>, vector<32x128xf32> -> vector<32x128xf32>
    %41 = arith.addf %40, %8 : vector<32x128xf32>
    %cst_29 = arith.constant dense<0xFF800000> : vector<32xf32>
    %42 = vector.multi_reduction <maximumf>, %41, %cst_29 [1] : vector<32x128xf32> to vector<32xf32>
    %43 = vector.shape_cast %42 : vector<32xf32> to vector<32x1xf32>
    %44 = vector.broadcast %43 : vector<32x1xf32> to vector<32x128xf32>
    %45 = arith.subf %41, %44 : vector<32x128xf32>
    %46 = math.exp %45 : vector<32x128xf32>
    %cst_30 = arith.constant dense<0.000000e+00> : vector<32x32xf32>
    %47 = tpu.matmul %46, %39, %cst_30 {dimension_numbers = #tpu.dot_dimension_numbers<[1], [0], [0], [1], [0, 0, 1, 1], [], []>} : vector<32x128xf32>, vector<128x32xf32>, vector<32x32xf32> -> vector<32x32xf32>
    %cst_31 = arith.constant dense<0.000000e+00> : vector<32x32xf32>
    %48 = tpu.matmul %46, %6, %cst_31 {dimension_numbers = #tpu.dot_dimension_numbers<[1], [0], [0], [1], [0, 0, 1, 1], [], []>} : vector<32x128xf32>, vector<128x32xf32>, vector<32x32xf32> -> vector<32x32xf32>
    %49 = tpu.reciprocal %48 {approx = true} : vector<32x32xf32> -> vector<32x32xf32>
    %50 = arith.mulf %47, %49 : vector<32x32xf32>
    %cst_32 = arith.constant dense<0.000000e+00> : vector<32x32xf32>
    %51 = tpu.matmul %50, %1, %cst_32 {dimension_numbers = #tpu.dot_dimension_numbers<[1], [0], [0], [1], [0, 0, 1, 1], [], []>} : vector<32x32xf32>, vector<32x32xf32>, vector<32x32xf32> -> vector<32x32xf32>
    %52 = vector.broadcast %11 : vector<1x32xf32> to vector<32x32xf32>
    %53 = arith.addf %51, %52 : vector<32x32xf32>
    %54 = arith.addf %29, %53 : vector<32x32xf32>
    %cst_33 = arith.constant dense<0.000000e+00> : vector<32xf32>
    %55 = vector.multi_reduction <add>, %54, %cst_33 [1] : vector<32x32xf32> to vector<32xf32>
    %56 = vector.shape_cast %55 : vector<32xf32> to vector<32x1xf32>
    %cst_34 = arith.constant 3.125000e-02 : f32
    %57 = vector.broadcast %cst_34 : f32 to vector<32x1xf32>
    %58 = arith.mulf %56, %57 : vector<32x1xf32>
    %59 = arith.mulf %54, %54 : vector<32x32xf32>
    %cst_35 = arith.constant dense<0.000000e+00> : vector<32xf32>
    %60 = vector.multi_reduction <add>, %59, %cst_35 [1] : vector<32x32xf32> to vector<32xf32>
    %61 = vector.shape_cast %60 : vector<32xf32> to vector<32x1xf32>
    %cst_36 = arith.constant 3.125000e-02 : f32
    %62 = vector.broadcast %cst_36 : f32 to vector<32x1xf32>
    %63 = arith.mulf %61, %62 : vector<32x1xf32>
    %64 = arith.mulf %58, %58 : vector<32x1xf32>
    %65 = arith.subf %63, %64 : vector<32x1xf32>
    %66 = vector.broadcast %58 : vector<32x1xf32> to vector<32x32xf32>
    %67 = arith.subf %54, %66 : vector<32x32xf32>
    %cst_37 = arith.constant 9.99999974E-6 : f32
    %68 = vector.broadcast %cst_37 : f32 to vector<32x1xf32>
    %69 = arith.addf %65, %68 : vector<32x1xf32>
    %70 = math.rsqrt %69 : vector<32x1xf32>
    %71 = vector.broadcast %70 : vector<32x1xf32> to vector<32x32xf32>
    %72 = arith.mulf %67, %71 : vector<32x32xf32>
    %73 = vector.broadcast %12 : vector<1x32xf32> to vector<32x32xf32>
    %74 = arith.mulf %72, %73 : vector<32x32xf32>
    %75 = vector.broadcast %13 : vector<1x32xf32> to vector<32x32xf32>
    %76 = arith.addf %74, %75 : vector<32x32xf32>
    %cst_38 = arith.constant dense<0.000000e+00> : vector<32x64xf32>
    %77 = tpu.matmul %76, %3, %cst_38 {dimension_numbers = #tpu.dot_dimension_numbers<[1], [0], [0], [1], [0, 0, 1, 1], [], []>} : vector<32x32xf32>, vector<32x64xf32>, vector<32x64xf32> -> vector<32x64xf32>
    %78 = vector.broadcast %14 : vector<1x64xf32> to vector<32x64xf32>
    %79 = arith.addf %77, %78 : vector<32x64xf32>
    %cst_39 = arith.constant 0.000000e+00 : f32
    %80 = vector.broadcast %cst_39 : f32 to vector<32x64xf32>
    %81 = arith.maximumf %79, %80 : vector<32x64xf32>
    %cst_40 = arith.constant dense<0.000000e+00> : vector<32x32xf32>
    %82 = tpu.matmul %81, %4, %cst_40 {dimension_numbers = #tpu.dot_dimension_numbers<[1], [1], [0], [0], [0, 0, 1, 0], [], []>} : vector<32x64xf32>, vector<32x64xf32>, vector<32x32xf32> -> vector<32x32xf32>
    %83 = vector.broadcast %15 : vector<1x32xf32> to vector<32x32xf32>
    %84 = arith.addf %82, %83 : vector<32x32xf32>
    %85 = arith.addf %76, %84 : vector<32x32xf32>
    %cst_41 = arith.constant dense<0.000000e+00> : vector<32xf32>
    %86 = vector.multi_reduction <add>, %85, %cst_41 [1] : vector<32x32xf32> to vector<32xf32>
    %87 = vector.shape_cast %86 : vector<32xf32> to vector<32x1xf32>
    %cst_42 = arith.constant 3.125000e-02 : f32
    %88 = vector.broadcast %cst_42 : f32 to vector<32x1xf32>
    %89 = arith.mulf %87, %88 : vector<32x1xf32>
    %90 = arith.mulf %85, %85 : vector<32x32xf32>
    %cst_43 = arith.constant dense<0.000000e+00> : vector<32xf32>
    %91 = vector.multi_reduction <add>, %90, %cst_43 [1] : vector<32x32xf32> to vector<32xf32>
    %92 = vector.shape_cast %91 : vector<32xf32> to vector<32x1xf32>
    %cst_44 = arith.constant 3.125000e-02 : f32
    %93 = vector.broadcast %cst_44 : f32 to vector<32x1xf32>
    %94 = arith.mulf %92, %93 : vector<32x1xf32>
    %95 = arith.mulf %89, %89 : vector<32x1xf32>
    %96 = arith.subf %94, %95 : vector<32x1xf32>
    %97 = vector.broadcast %89 : vector<32x1xf32> to vector<32x32xf32>
    %98 = arith.subf %85, %97 : vector<32x32xf32>
    %cst_45 = arith.constant 9.99999974E-6 : f32
    %99 = vector.broadcast %cst_45 : f32 to vector<32x1xf32>
    %100 = arith.addf %96, %99 : vector<32x1xf32>
    %101 = math.rsqrt %100 : vector<32x1xf32>
    %102 = vector.broadcast %101 : vector<32x1xf32> to vector<32x32xf32>
    %103 = arith.mulf %98, %102 : vector<32x32xf32>
    %104 = vector.broadcast %16 : vector<1x32xf32> to vector<32x32xf32>
    %105 = arith.mulf %103, %104 : vector<32x32xf32>
    %106 = vector.broadcast %17 : vector<1x32xf32> to vector<32x32xf32>
    %107 = arith.addf %105, %106 : vector<32x32xf32>
    %108 = vector.extract_strided_slice %107 {offsets = [0, 0], sizes = [2, 32], strides = [1, 1]} : vector<32x32xf32> to vector<2x32xf32>
    %cst_46 = arith.constant dense<0.000000e+00> : vector<2x64xf32>
    %109 = tpu.matmul %108, %5, %cst_46 {dimension_numbers = #tpu.dot_dimension_numbers<[1], [0], [0], [1], [0, 0, 1, 1], [], []>} : vector<2x32xf32>, vector<32x64xf32>, vector<2x64xf32> -> vector<2x64xf32>
    %110 = vector.broadcast %18 : vector<1x64xf32> to vector<2x64xf32>
    %111 = arith.addf %109, %110 : vector<2x64xf32>
    %cst_47 = arith.constant dense<0.000000e+00> : vector<2xf32>
    %112 = vector.multi_reduction <add>, %111, %cst_47 [1] : vector<2x64xf32> to vector<2xf32>
    %113 = vector.shape_cast %112 : vector<2xf32> to vector<2x1xf32>
    %cst_48 = arith.constant 1.562500e-02 : f32
    %114 = vector.broadcast %cst_48 : f32 to vector<2x1xf32>
    %115 = arith.mulf %113, %114 : vector<2x1xf32>
    %116 = arith.mulf %111, %111 : vector<2x64xf32>
    %cst_49 = arith.constant dense<0.000000e+00> : vector<2xf32>
    %117 = vector.multi_reduction <add>, %116, %cst_49 [1] : vector<2x64xf32> to vector<2xf32>
    %118 = vector.shape_cast %117 : vector<2xf32> to vector<2x1xf32>
    %cst_50 = arith.constant 1.562500e-02 : f32
    %119 = vector.broadcast %cst_50 : f32 to vector<2x1xf32>
    %120 = arith.mulf %118, %119 : vector<2x1xf32>
    %121 = arith.mulf %115, %115 : vector<2x1xf32>
    %122 = arith.subf %120, %121 : vector<2x1xf32>
    %123 = vector.broadcast %115 : vector<2x1xf32> to vector<2x64xf32>
    %124 = arith.subf %111, %123 : vector<2x64xf32>
    %cst_51 = arith.constant 9.99999974E-6 : f32
    %125 = vector.broadcast %cst_51 : f32 to vector<2x1xf32>
    %126 = arith.addf %122, %125 : vector<2x1xf32>
    %127 = math.rsqrt %126 : vector<2x1xf32>
    %128 = vector.broadcast %127 : vector<2x1xf32> to vector<2x64xf32>
    %129 = arith.mulf %124, %128 : vector<2x64xf32>
    %130 = vector.broadcast %19 : vector<1x64xf32> to vector<2x64xf32>
    %131 = arith.mulf %129, %130 : vector<2x64xf32>
    %132 = vector.broadcast %20 : vector<1x64xf32> to vector<2x64xf32>
    %133 = arith.addf %131, %132 : vector<2x64xf32>
    %c0_52 = arith.constant 0 : index
    %c0_53 = arith.constant 0 : index
    %134 = vector.load %arg3[%c0_52, %c0_53] : memref<2x64xf32, #tpu.memory_space<vmem>>, vector<2x64xf32>
    tpu.vector_store %arg3[%c0_52, %c0_53], %133 {strides = array<i32>} : memref<2x64xf32, #tpu.memory_space<vmem>>, vector<2x64xf32>,
    return
  }
}

</mosaic_0001>

<llo_original>
// kernel: episodic_memory_encoder.1
$region0: #{episodic_memory_encoder.1}
  #allocation0 [shape = 'u32[]', space=smem, size = 0x4, offset = 0x4, fixed_abs, tag = 'smem constant byte address 0x4 - core index']
  #allocation1 [shape = 'u32[72,128]{1,0:T(1,128)}', space=vmem, size = 0x9000, scoped, tag = 'internal scratch']
  %s0 = inlined_call_operand.vmem [shape: f32[32,32], index: 0, kind: input, shape index: {}]
  %s1 = inlined_call_operand.vmem [shape: f32[32,352], index: 1, kind: input, shape index: {}]
  %s2 = inlined_call_operand.vmem [shape: f32[128,192], index: 2, kind: input, shape index: {}]
  %s3 = inlined_call_operand.hbm [shape: f32[2,64], index: 3, kind: output, shape index: {}]
  %s4 = sld [smem:[#allocation0]]
  $region22: #{episodic_memory_encoder.1} parent=0
    _
  %s6 = ssub.s32 1, %s4
  %s7 = scalar_select 0, %s6, %s4
  $region1: #{episodic_memory_encoder.1} parent=0
    #allocation2 [shape = 'u8[1024]{0}', space=vmem, size = 0x400, scoped, tag = 'output window, operand 0, single buffered']
    #allocation3 [shape = 's32[1]{0}', space=sflag, size = 0x4, scoped, tag = 'scoped memory for episodic_memory_encoder.1']
    %8 = vsyncpa [#allocation3], 0
    // Predicated region
    $region2: #{episodic_memory_encoder.1} parent=1 // pred_check
      _
    $region3: #{episodic_memory_encoder.1} parent=1 // pred_check_branch
      %10 = sbr.rel (0) target = $region5
    $region4: #{episodic_memory_encoder.1} parent=1 // pred_region
      _
    $region5: #{episodic_memory_encoder.1} parent=1 // pred_fallthru
      _
    // Predicated region
    $region6: #{episodic_memory_encoder.1} parent=1 // pred_check
      _
    $region7: #{episodic_memory_encoder.1} parent=1 // pred_check_branch
      %12 = sbr.rel (0) target = $region9
    $region8: #{episodic_memory_encoder.1} parent=1 // pred_region
      _
    $region9: #{episodic_memory_encoder.1} parent=1 // pred_fallthru
      _
    // Predicated region
    $region10: #{episodic_memory_encoder.1} parent=1 // pred_check
      _
    $region11: #{episodic_memory_encoder.1} parent=1 // pred_check_branch
      %14 = sbr.rel (0) target = $region13
    $region12: #{episodic_memory_encoder.1} parent=1 // pred_region
      _
    $region13: #{episodic_memory_encoder.1} parent=1 // pred_fallthru
      _
    %v15 = vld [vmem:[%s1] sm:$0xff]
    %v16 = vld [vmem:[%s1 + $0x18] sm:$0xff]
    %v17 = vld [vmem:[%s1 + $0x30] sm:$0xff]
    %v18 = vld [vmem:[%s1 + $0x48] sm:$0xff]
    %v19 = vld [vmem:[%s1 + $0x8] sm:$0xff]
    %v20 = vld [vmem:[%s1 + $0x20] sm:$0xff]
    %v21 = vld [vmem:[%s1 + $0x38] sm:$0xff]
    %v22 = vld [vmem:[%s1 + $0x50] sm:$0xff]
    %v23 = vld [vmem:[%s1 + $0x10] sm:$0xff]
    %v24 = vld [vmem:[%s1 + $0x28] sm:$0xff]
    %v25 = vld [vmem:[%s1 + $0x40] sm:$0xff]
    %v26 = vld [vmem:[%s1 + $0x58] sm:$0xff]
    %v27 = vld [vmem:[%s2] sm:$0xff]
    %v28 = vld [vmem:[%s2 + $0x10] sm:$0xff]
    %v29 = vld [vmem:[%s2 + $0x20] sm:$0xff]
    %v30 = vld [vmem:[%s2 + $0x30] sm:$0xff]
    %v31 = vld [vmem:[%s2 + $0x40] sm:$0xff]
    %v32 = vld [vmem:[%s2 + $0x50] sm:$0xff]
    %v33 = vld [vmem:[%s2 + $0x60] sm:$0xff]
    %v34 = vld [vmem:[%s2 + $0x70] sm:$0xff]
    %v35 = vld [vmem:[%s2 + $0x80] sm:$0xff]
    %v36 = vld [vmem:[%s2 + $0x90] sm:$0xff]
    %v37 = vld [vmem:[%s2 + $0xa0] sm:$0xff]
    %v38 = vld [vmem:[%s2 + $0xb0] sm:$0xff]
    %v39 = vld [vmem:[%s2 + $0xc0] sm:$0xff]
    %v40 = vld [vmem:[%s2 + $0xd0] sm:$0xff]
    %v41 = vld [vmem:[%s2 + $0xe0] sm:$0xff]
    %v42 = vld [vmem:[%s2 + $0xf0] sm:$0xff]
    %v43 = vld [vmem:[%s2 + $0x8] sm:$0xff]
    %v44 = vld [vmem:[%s2 + $0x18] sm:$0xff]
    %v45 = vld [vmem:[%s2 + $0x28] sm:$0xff]
    %v46 = vld [vmem:[%s2 + $0x38] sm:$0xff]
    %v47 = vld [vmem:[%s2 + $0x40] ss:$0 sm:$0xff]
    %v48 = vld [vmem:[%s2 + $0x41] ss:$0 sm:$0xff]
    %v49 = vld [vmem:[%s2 + $0x49] ss:$0 sm:$0xff]
    %v50 = vld [vmem:[%s2 + $0x42] ss:$0 sm:$0xff]
    %v51 = vld [vmem:[%s2 + $0x43] ss:$0 sm:$0xff]
    %v52 = vld [vmem:[%s2 + $0x44] ss:$0 sm:$0xff]
    %v53 = vld [vmem:[%s2 + $0x45] ss:$0 sm:$0xff]
    %v54 = vld [vmem:[%s2 + $0x46] ss:$0 sm:$0xff]
    %v55 = vld [vmem:[%s2 + $0x47] ss:$0 sm:$0xff]
    %v56 = vld [vmem:[%s2 + $0x50] ss:$0 sm:$0xff]
    %v57 = vld [vmem:[%s2 + $0x51] ss:$0 sm:$0xff]
    %v58 = vld [vmem:[%s2 + $0x52] ss:$0 sm:$0xff]
    %v59 = vld [vmem:[%s2 + $0x53] ss:$0 sm:$0xff]
    %v60 = vld [vmem:[%s0] sm:$0xff]
    %v61 = vld [vmem:[%s0 + $0x8] sm:$0xff]
    %v62 = vld [vmem:[%s0 + $0x10] sm:$0xff]
    %v63 = vld [vmem:[%s0 + $0x18] sm:$0xff]
    %65 = vrot.lane.b32.xlu0 %v47, 64
    %v66 = vpop.permute.xlu0 %65
    %vm68 = vcmask 261120
    %v70 = vsel %vm68, %v60, 0
    %v73 = vsel %vm68, %v61, 0
    %v76 = vsel %vm68, %v62, 0
    %v79 = vsel %vm68, %v63, 0
    %81 = vmatpush.msra.mxu0 0.0
    %82 = vmatpush.msra.mxu0 0.0
    %83 = vmatpush.msra.mxu0 0.0
    %84 = vmatpush.msra.mxu0 0.0
    %85 = vmatpush.msra.mxu0 0.0
    %86 = vmatpush.msra.mxu0 0.0
    %87 = vmatpush.msra.mxu0 0.0
    %88 = vmatpush.msra.mxu0 0.0
    %89 = vmatpush.msra.mxu0 0.0
    %90 = vmatpush.msra.mxu0 0.0
    %91 = vmatpush.msra.mxu0 0.0
    %92 = vmatpush.msra.mxu0 0.0
    %93 = vmatpush.msra.mxu0 %v22
    %94 = vmatpush.msra.mxu0 %v21
    %95 = vmatpush.msra.mxu0 %v20
    %96 = vmatpush.msra.mxu0 %v19
    %97 = vmatmul.f32.gmra.mxu0 %v70
    %v98 = vpop.f32.mrf.mxu0
    %v99 = vadd.f32 %v66, %v98
    %100 = vmatmul.f32.gmra.mxu0 %v73
    %v101 = vpop.f32.mrf.mxu0
    %v102 = vadd.f32 %v66, %v101
    %103 = vmatmul.f32.gmra.mxu0 %v76
    %v104 = vpop.f32.mrf.mxu0
    %v105 = vadd.f32 %v66, %v104
    %106 = vmatmul.f32.gmra.mxu0 %v79
    %v107 = vpop.f32.mrf.mxu0
    %v108 = vadd.f32 %v66, %v107
    %109 = vdwg.mxu0
    %vm110 = vcmp.gt.f32.partialorder %v27, 0.5
    %vm111 = vcmp.gt.f32.partialorder %v28, 0.5
    %vm112 = vcmp.gt.f32.partialorder %v29, 0.5
    %vm113 = vcmp.gt.f32.partialorder %v30, 0.5
    %v114 = vmax.f32 %v99, 0.0
    %v115 = vmax.f32 %v102, 0.0
    %v116 = vmax.f32 %v105, 0.0
    %v117 = vmax.f32 %v108, 0.0
    %122 = vrot.lane.b32.xlu0 %v114, 32
    %v123 = vpop.permute.xlu0 %122
    %124 = vrot.lane.b32.xlu0 %v115, 32
    %v125 = vpop.permute.xlu0 %124
    %126 = vrot.lane.b32.xlu0 %v116, 32
    %v127 = vpop.permute.xlu0 %126
    %128 = vrot.lane.b32.xlu0 %v117, 32
    %v129 = vpop.permute.xlu0 %128
    %138 = vrot.lane.b32.xlu0 %v99, 32
    %v139 = vpop.permute.xlu0 %138
    %140 = vrot.lane.b32.xlu0 %v102, 32
    %v141 = vpop.permute.xlu0 %140
    %142 = vrot.lane.b32.xlu0 %v105, 32
    %v143 = vpop.permute.xlu0 %142
    %144 = vrot.lane.b32.xlu0 %v108, 32
    %v145 = vpop.permute.xlu0 %144
    %v150 = vsel %vm110, %v123, %v139
    %v151 = vsel %vm111, %v125, %v141
    %v152 = vsel %vm112, %v127, %v143
    %v153 = vsel %vm113, %v129, %v145
    %158 = vrot.lane.b32.xlu0 %v150, 96
    %v159 = vpop.permute.xlu0 %158
    %160 = vrot.lane.b32.xlu0 %v151, 96
    %v161 = vpop.permute.xlu0 %160
    %162 = vrot.lane.b32.xlu0 %v152, 96
    %v163 = vpop.permute.xlu0 %162
    %164 = vrot.lane.b32.xlu0 %v153, 96
    %v165 = vpop.permute.xlu0 %164
    %168 = vrot.lane.b32.xlu0 %v48, 64
    %v169 = vpop.permute.xlu0 %168
    %170 = vrot.lane.b32.xlu0 %v49, 64
    %v171 = vpop.permute.xlu0 %170
    %vm172 = vcmask 523264
    %v173 = vsel %vm172, %v169, %v171
    %v175 = vsel %vm68, %v159, 0
    %v177 = vsel %vm68, %v161, 0
    %v179 = vsel %vm68, %v163, 0
    %v181 = vsel %vm68, %v165, 0
    %183 = vmatpush.msra.mxu0 0.0
    %184 = vmatpush.msra.mxu0 0.0
    %185 = vmatpush.msra.mxu0 0.0
    %186 = vmatpush.msra.mxu0 0.0
    %187 = vmatpush.msra.mxu0 0.0
    %188 = vmatpush.msra.mxu0 0.0
    %189 = vmatpush.msra.mxu0 0.0
    %190 = vmatpush.msra.mxu0 0.0
    %191 = vmatpush.msra.mxu0 0.0
    %192 = vmatpush.msra.mxu0 0.0
    %193 = vmatpush.msra.mxu0 0.0
    %194 = vmatpush.msra.mxu0 0.0
    %195 = vmatpush.msra.mxu0 %v18
    %196 = vmatpush.msra.mxu0 %v17
    %197 = vmatpush.msra.mxu0 %v16
    %198 = vmatpush.msra.mxu0 %v15
    %199 = vmatmul.f32.gmra.mxu0 %v175
    %v200 = vpop.f32.mrf.mxu0
    %v201 = vadd.f32 %v173, %v200
    %202 = vmatmul.f32.gmra.mxu0 %v177
    %v203 = vpop.f32.mrf.mxu0
    %v204 = vadd.f32 %v173, %v203
    %205 = vmatmul.f32.gmra.mxu0 %v179
    %v206 = vpop.f32.mrf.mxu0
    %v207 = vadd.f32 %v173, %v206
    %208 = vmatmul.f32.gmra.mxu0 %v181
    %v209 = vpop.f32.mrf.mxu0
    %v210 = vadd.f32 %v173, %v209
    %211 = vdwg.mxu0
    %228 = vrot.lane.b32.xlu0 %v27, 32
    %v229 = vpop.permute.xlu0 %228
    %230 = vrot.lane.b32.xlu0 %v28, 32
    %v231 = vpop.permute.xlu0 %230
    %232 = vrot.lane.b32.xlu0 %v29, 32
    %v233 = vpop.permute.xlu0 %232
    %234 = vrot.lane.b32.xlu0 %v30, 32
    %v235 = vpop.permute.xlu0 %234
    %236 = vrot.lane.b32.xlu0 %v31, 32
    %v237 = vpop.permute.xlu0 %236
    %238 = vrot.lane.b32.xlu0 %v32, 32
    %v239 = vpop.permute.xlu0 %238
    %240 = vrot.lane.b32.xlu0 %v33, 32
    %v241 = vpop.permute.xlu0 %240
    %242 = vrot.lane.b32.xlu0 %v34, 32
    %v243 = vpop.permute.xlu0 %242
    %244 = vrot.lane.b32.xlu0 %v35, 32
    %v245 = vpop.permute.xlu0 %244
    %246 = vrot.lane.b32.xlu0 %v36, 32
    %v247 = vpop.permute.xlu0 %246
    %248 = vrot.lane.b32.xlu0 %v37, 32
    %v249 = vpop.permute.xlu0 %248
    %250 = vrot.lane.b32.xlu0 %v38, 32
    %v251 = vpop.permute.xlu0 %250
    %252 = vrot.lane.b32.xlu0 %v39, 32
    %v253 = vpop.permute.xlu0 %252
    %254 = vrot.lane.b32.xlu0 %v40, 32
    %v255 = vpop.permute.xlu0 %254
    %256 = vrot.lane.b32.xlu0 %v41, 32
    %v257 = vpop.permute.xlu0 %256
    %258 = vrot.lane.b32.xlu0 %v42, 32
    %v259 = vpop.permute.xlu0 %258
    %v276 = vmul.f32 %v201, %v229
    %v277 = vmul.f32 %v204, %v231
    %v278 = vmul.f32 %v207, %v233
    %v279 = vmul.f32 %v210, %v235
    %v280 = vmul.f32 %v201, %v237
    %v281 = vmul.f32 %v204, %v239
    %v282 = vmul.f32 %v207, %v241
    %v283 = vmul.f32 %v210, %v243
    %v284 = vmul.f32 %v201, %v245
    %v285 = vmul.f32 %v204, %v247
    %v286 = vmul.f32 %v207, %v249
    %v287 = vmul.f32 %v210, %v251
    %v288 = vmul.f32 %v201, %v253
    %v289 = vmul.f32 %v204, %v255
    %v290 = vmul.f32 %v207, %v257
    %v291 = vmul.f32 %v210, %v259
    %292 = vrot.lane.b32.xlu0 %v27, 64
    %v293 = vpop.permute.xlu0 %292
    %294 = vrot.lane.b32.xlu0 %v28, 64
    %v295 = vpop.permute.xlu0 %294
    %296 = vrot.lane.b32.xlu0 %v29, 64
    %v297 = vpop.permute.xlu0 %296
    %298 = vrot.lane.b32.xlu0 %v30, 64
    %v299 = vpop.permute.xlu0 %298
    %300 = vrot.lane.b32.xlu0 %v31, 64
    %v301 = vpop.permute.xlu0 %300
    %302 = vrot.lane.b32.xlu0 %v32, 64
    %v303 = vpop.permute.xlu0 %302
    %304 = vrot.lane.b32.xlu0 %v33, 64
    %v305 = vpop.permute.xlu0 %304
    %306 = vrot.lane.b32.xlu0 %v34, 64
    %v307 = vpop.permute.xlu0 %306
    %308 = vrot.lane.b32.xlu0 %v35, 64
    %v309 = vpop.permute.xlu0 %308
    %310 = vrot.lane.b32.xlu0 %v36, 64
    %v311 = vpop.permute.xlu0 %310
    %312 = vrot.lane.b32.xlu0 %v37, 64
    %v313 = vpop.permute.xlu0 %312
    %314 = vrot.lane.b32.xlu0 %v38, 64
    %v315 = vpop.permute.xlu0 %314
    %316 = vrot.lane.b32.xlu0 %v39, 64
    %v317 = vpop.permute.xlu0 %316
    %318 = vrot.lane.b32.xlu0 %v40, 64
    %v319 = vpop.permute.xlu0 %318
    %320 = vrot.lane.b32.xlu0 %v41, 64
    %v321 = vpop.permute.xlu0 %320
    %322 = vrot.lane.b32.xlu0 %v42, 64
    %v323 = vpop.permute.xlu0 %322
    %v340 = vmul.f32 %v201, %v293
    %v341 = vmul.f32 %v204, %v295
    %v342 = vmul.f32 %v207, %v297
    %v343 = vmul.f32 %v210, %v299
    %v344 = vmul.f32 %v201, %v301
    %v345 = vmul.f32 %v204, %v303
    %v346 = vmul.f32 %v207, %v305
    %v347 = vmul.f32 %v210, %v307
    %v348 = vmul.f32 %v201, %v309
    %v349 = vmul.f32 %v204, %v311
    %v350 = vmul.f32 %v207, %v313
    %v351 = vmul.f32 %v210, %v315
    %v352 = vmul.f32 %v201, %v317
    %v353 = vmul.f32 %v204, %v319
    %v354 = vmul.f32 %v207, %v321
    %v355 = vmul.f32 %v210, %v323
    %372 = vrot.lane.b32.xlu0 %v276, 96
    %v373 = vpop.permute.xlu0 %372
    %374 = vrot.lane.b32.xlu0 %v277, 96
    %v375 = vpop.permute.xlu0 %374
    %376 = vrot.lane.b32.xlu0 %v278, 96
    %v377 = vpop.permute.xlu0 %376
    %378 = vrot.lane.b32.xlu0 %v279, 96
    %v379 = vpop.permute.xlu0 %378
    %380 = vrot.lane.b32.xlu0 %v280, 96
    %v381 = vpop.permute.xlu0 %380
    %382 = vrot.lane.b32.xlu0 %v281, 96
    %v383 = vpop.permute.xlu0 %382
    %384 = vrot.lane.b32.xlu0 %v282, 96
    %v385 = vpop.permute.xlu0 %384
    %386 = vrot.lane.b32.xlu0 %v283, 96
    %v387 = vpop.permute.xlu0 %386
    %388 = vrot.lane.b32.xlu0 %v284, 96
    %v389 = vpop.permute.xlu0 %388
    %390 = vrot.lane.b32.xlu0 %v285, 96
    %v391 = vpop.permute.xlu0 %390
    %392 = vrot.lane.b32.xlu0 %v286, 96
    %v393 = vpop.permute.xlu0 %392
    %394 = vrot.lane.b32.xlu0 %v287, 96
    %v395 = vpop.permute.xlu0 %394
    %396 = vrot.lane.b32.xlu0 %v288, 96
    %v397 = vpop.permute.xlu0 %396
    %398 = vrot.lane.b32.xlu0 %v289, 96
    %v399 = vpop.permute.xlu0 %398
    %400 = vrot.lane.b32.xlu0 %v290, 96
    %v401 = vpop.permute.xlu0 %400
    %402 = vrot.lane.b32.xlu0 %v291, 96
    %v403 = vpop.permute.xlu0 %402
    %408 = vrot.lane.b32.xlu0 %v43, 64
    %v409 = vpop.permute.xlu0 %408
    %410 = vrot.lane.b32.xlu0 %v44, 64
    %v411 = vpop.permute.xlu0 %410
    %412 = vrot.lane.b32.xlu0 %v45, 64
    %v413 = vpop.permute.xlu0 %412
    %414 = vrot.lane.b32.xlu0 %v46, 64
    %v415 = vpop.permute.xlu0 %414
    %v416 = vsel %vm172, %v293, %v409
    %v417 = vsel %vm172, %v295, %v411
    %v418 = vsel %vm172, %v297, %v413
    %v419 = vsel %vm172, %v299, %v415
    %v425 = vsel %vm68, %v201, 0
    %v428 = vsel %vm68, %v204, 0
    %v431 = vsel %vm68, %v207, 0
    %v434 = vsel %vm68, %v210, 0
    %v436 = vsel %vm68, %v373, 0
    %v438 = vsel %vm68, %v375, 0
    %v440 = vsel %vm68, %v377, 0
    %v442 = vsel %vm68, %v379, 0
    %v444 = vsel %vm68, %v381, 0
    %v446 = vsel %vm68, %v383, 0
    %v448 = vsel %vm68, %v385, 0
    %v450 = vsel %vm68, %v387, 0
    %v452 = vsel %vm68, %v389, 0
    %v454 = vsel %vm68, %v391, 0
    %v456 = vsel %vm68, %v393, 0
    %v458 = vsel %vm68, %v395, 0
    %v460 = vsel %vm68, %v397, 0
    %v462 = vsel %vm68, %v399, 0
    %v464 = vsel %vm68, %v401, 0
    %v466 = vsel %vm68, %v403, 0
    %468 = vmatpush.xpose.msra.mxu0 %v466
    %469 = vmatpush.xpose.msra.mxu0 %v464
    %470 = vmatpush.xpose.msra.mxu0 %v462
    %471 = vmatpush.xpose.msra.mxu0 %v460
    %472 = vmatpush.xpose.msra.mxu0 %v458
    %473 = vmatpush.xpose.msra.mxu0 %v456
    %474 = vmatpush.xpose.msra.mxu0 %v454
    %475 = vmatpush.xpose.msra.mxu0 %v452
    %476 = vmatpush.xpose.msra.mxu0 %v450
    %477 = vmatpush.xpose.msra.mxu0 %v448
    %478 = vmatpush.xpose.msra.mxu0 %v446
    %479 = vmatpush.xpose.msra.mxu0 %v444
    %480 = vmatpush.xpose.msra.mxu0 %v442
    %481 = vmatpush.xpose.msra.mxu0 %v440
    %482 = vmatpush.xpose.msra.mxu0 %v438
    %483 = vmatpush.xpose.msra.mxu0 %v436
    %484 = vmatmul.f32.gmra.mxu0 %v425
    %v485 = vpop.f32.mrf.mxu0
    %v486 = vadd.f32 %v416, %v485
    %487 = vmatmul.f32.gmra.mxu0 %v428
    %v488 = vpop.f32.mrf.mxu0
    %v489 = vadd.f32 %v417, %v488
    %490 = vmatmul.f32.gmra.mxu0 %v431
    %v491 = vpop.f32.mrf.mxu0
    %v492 = vadd.f32 %v418, %v491
    %493 = vmatmul.f32.gmra.mxu0 %v434
    %v494 = vpop.f32.mrf.mxu0
    %v495 = vadd.f32 %v419, %v494
    %496 = vdwg.mxu0
    %497 = vmax.xlane.f32.xlu0 %v486
    %v498 = vpop.xlane.xlu0 %497
    %499 = vmax.xlane.f32.xlu0 %v489
    %v500 = vpop.xlane.xlu0 %499
    %501 = vmax.xlane.f32.xlu0 %v492
    %v502 = vpop.xlane.xlu0 %501
    %503 = vmax.xlane.f32.xlu0 %v495
    %v504 = vpop.xlane.xlu0 %503
    %v505 = vsub.f32 %v486, %v498
    %v506 = vsub.f32 %v489, %v500
    %v507 = vsub.f32 %v492, %v502
    %v508 = vsub.f32 %v495, %v504
    %v509 = vmul.f32 %v505, 1.442695
    %v510 = vpow.pop %v509
    %v511 = vmul.f32 %v506, 1.442695
    %v512 = vpow.pop %v511
    %v513 = vmul.f32 %v507, 1.442695
    %v514 = vpow.pop %v513
    %v515 = vmul.f32 %v508, 1.442695
    %v516 = vpow.pop %v515
    %533 = vrot.lane.b32.xlu0 %v340, 64
    %v534 = vpop.permute.xlu0 %533
    %535 = vrot.lane.b32.xlu0 %v341, 64
    %v536 = vpop.permute.xlu0 %535
    %537 = vrot.lane.b32.xlu0 %v342, 64
    %v538 = vpop.permute.xlu0 %537
    %539 = vrot.lane.b32.xlu0 %v343, 64
    %v540 = vpop.permute.xlu0 %539
    %541 = vrot.lane.b32.xlu0 %v344, 64
    %v542 = vpop.permute.xlu0 %541
    %543 = vrot.lane.b32.xlu0 %v345, 64
    %v544 = vpop.permute.xlu0 %543
    %545 = vrot.lane.b32.xlu0 %v346, 64
    %v546 = vpop.permute.xlu0 %545
    %547 = vrot.lane.b32.xlu0 %v347, 64
    %v548 = vpop.permute.xlu0 %547
    %549 = vrot.lane.b32.xlu0 %v348, 64
    %v550 = vpop.permute.xlu0 %549
    %551 = vrot.lane.b32.xlu0 %v349, 64
    %v552 = vpop.permute.xlu0 %551
    %553 = vrot.lane.b32.xlu0 %v350, 64
    %v554 = vpop.permute.xlu0 %553
    %555 = vrot.lane.b32.xlu0 %v351, 64
    %v556 = vpop.permute.xlu0 %555
    %557 = vrot.lane.b32.xlu0 %v352, 64
    %v558 = vpop.permute.xlu0 %557
    %559 = vrot.lane.b32.xlu0 %v353, 64
    %v560 = vpop.permute.xlu0 %559
    %561 = vrot.lane.b32.xlu0 %v354, 64
    %v562 = vpop.permute.xlu0 %561
    %563 = vrot.lane.b32.xlu0 %v355, 64
    %v564 = vpop.permute.xlu0 %563
    %581 = vmatpush.msra.mxu0 %v564
    %582 = vmatpush.msra.mxu0 %v562
    %583 = vmatpush.msra.mxu0 %v560
    %584 = vmatpush.msra.mxu0 %v558
    %585 = vmatpush.msra.mxu0 %v556
    %586 = vmatpush.msra.mxu0 %v554
    %587 = vmatpush.msra.mxu0 %v552
    %588 = vmatpush.msra.mxu0 %v550
    %589 = vmatpush.msra.mxu0 %v548
    %590 = vmatpush.msra.mxu0 %v546
    %591 = vmatpush.msra.mxu0 %v544
    %592 = vmatpush.msra.mxu0 %v542
    %593 = vmatpush.msra.mxu0 %v540
    %594 = vmatpush.msra.mxu0 %v538
    %595 = vmatpush.msra.mxu0 %v536
    %596 = vmatpush.msra.mxu0 %v534
    %597 = vmatmul.f32.gmra.mxu0 %v510
    %v598 = vpop.f32.mrf.mxu0
    %v599 = vadd.f32 0.0, %v598
    %600 = vmatmul.f32.gmra.mxu0 %v512
    %v601 = vpop.f32.mrf.mxu0
    %v602 = vadd.f32 0.0, %v601
    %603 = vmatmul.f32.gmra.mxu0 %v514
    %v604 = vpop.f32.mrf.mxu0
    %v605 = vadd.f32 0.0, %v604
    %606 = vmatmul.f32.gmra.mxu0 %v516
    %v607 = vpop.f32.mrf.mxu0
    %v608 = vadd.f32 0.0, %v607
    %609 = vdwg.mxu0
    %610 = vmatpush.msra.mxu0 %v42
    %611 = vmatpush.msra.mxu0 %v41
    %612 = vmatpush.msra.mxu0 %v40
    %613 = vmatpush.msra.mxu0 %v39
    %614 = vmatpush.msra.mxu0 %v38
    %615 = vmatpush.msra.mxu0 %v37
    %616 = vmatpush.msra.mxu0 %v36
    %617 = vmatpush.msra.mxu0 %v35
    %618 = vmatpush.msra.mxu0 %v34
    %619 = vmatpush.msra.mxu0 %v33
    %620 = vmatpush.msra.mxu0 %v32
    %621 = vmatpush.msra.mxu0 %v31
    %622 = vmatpush.msra.mxu0 %v30
    %623 = vmatpush.msra.mxu0 %v29
    %624 = vmatpush.msra.mxu0 %v28
    %625 = vmatpush.msra.mxu0 %v27
    %626 = vmatmul.f32.gmra.mxu0 %v510
    %v627 = vpop.f32.mrf.mxu0
    %v628 = vadd.f32 0.0, %v627
    %629 = vmatmul.f32.gmra.mxu0 %v512
    %v630 = vpop.f32.mrf.mxu0
    %v631 = vadd.f32 0.0, %v630
    %632 = vmatmul.f32.gmra.mxu0 %v514
    %v633 = vpop.f32.mrf.mxu0
    %v634 = vadd.f32 0.0, %v633
    %635 = vmatmul.f32.gmra.mxu0 %v516
    %v636 = vpop.f32.mrf.mxu0
    %v637 = vadd.f32 0.0, %v636
    %638 = vdwg.mxu0
    %v639 = vrcp.pop %v628
    %v640 = vrcp.pop %v631
    %v641 = vrcp.pop %v634
    %v642 = vrcp.pop %v637
    %v643 = vmul.f32 %v599, %v639
    %v644 = vmul.f32 %v602, %v640
    %v645 = vmul.f32 %v605, %v641
    %v646 = vmul.f32 %v608, %v642
    %651 = vrot.lane.b32.xlu0 %v15, 32
    %v652 = vpop.permute.xlu0 %651
    %653 = vrot.lane.b32.xlu0 %v16, 32
    %v654 = vpop.permute.xlu0 %653
    %655 = vrot.lane.b32.xlu0 %v17, 32
    %v656 = vpop.permute.xlu0 %655
    %657 = vrot.lane.b32.xlu0 %v18, 32
    %v658 = vpop.permute.xlu0 %657
    %664 = vrot.lane.b32.xlu0 %v50, 64
    %v665 = vpop.permute.xlu0 %664
    %v668 = vsel %vm68, %v643, 0
    %v671 = vsel %vm68, %v644, 0
    %v674 = vsel %vm68, %v645, 0
    %v677 = vsel %vm68, %v646, 0
    %679 = vmatpush.msra.mxu0 0.0
    %680 = vmatpush.msra.mxu0 0.0
    %681 = vmatpush.msra.mxu0 0.0
    %682 = vmatpush.msra.mxu0 0.0
    %683 = vmatpush.msra.mxu0 0.0
    %684 = vmatpush.msra.mxu0 0.0
    %685 = vmatpush.msra.mxu0 0.0
    %686 = vmatpush.msra.mxu0 0.0
    %687 = vmatpush.msra.mxu0 0.0
    %688 = vmatpush.msra.mxu0 0.0
    %689 = vmatpush.msra.mxu0 0.0
    %690 = vmatpush.msra.mxu0 0.0
    %691 = vmatpush.msra.mxu0 %v658
    %692 = vmatpush.msra.mxu0 %v656
    %693 = vmatpush.msra.mxu0 %v654
    %694 = vmatpush.msra.mxu0 %v652
    %695 = vmatmul.f32.gmra.mxu0 %v668
    %v696 = vpop.f32.mrf.mxu0
    %v697 = vadd.f32 %v665, %v696
    %698 = vmatmul.f32.gmra.mxu0 %v671
    %v699 = vpop.f32.mrf.mxu0
    %v700 = vadd.f32 %v665, %v699
    %701 = vmatmul.f32.gmra.mxu0 %v674
    %v702 = vpop.f32.mrf.mxu0
    %v703 = vadd.f32 %v665, %v702
    %704 = vmatmul.f32.gmra.mxu0 %v677
    %v705 = vpop.f32.mrf.mxu0
    %v706 = vadd.f32 %v665, %v705
    %707 = vdwg.mxu0
    %712 = vrot.lane.b32.xlu0 %v697, 32
    %v713 = vpop.permute.xlu0 %712
    %714 = vrot.lane.b32.xlu0 %v700, 32
    %v715 = vpop.permute.xlu0 %714
    %716 = vrot.lane.b32.xlu0 %v703, 32
    %v717 = vpop.permute.xlu0 %716
    %718 = vrot.lane.b32.xlu0 %v706, 32
    %v719 = vpop.permute.xlu0 %718
    %v724 = vadd.f32 %v150, %v713
    %v725 = vadd.f32 %v151, %v715
    %v726 = vadd.f32 %v152, %v717
    %v727 = vadd.f32 %v153, %v719
    %732 = vrot.lane.b32.xlu0 %v724, 96
    %v733 = vpop.permute.xlu0 %732
    %734 = vrot.lane.b32.xlu0 %v725, 96
    %v735 = vpop.permute.xlu0 %734
    %736 = vrot.lane.b32.xlu0 %v726, 96
    %v737 = vpop.permute.xlu0 %736
    %738 = vrot.lane.b32.xlu0 %v727, 96
    %v739 = vpop.permute.xlu0 %738
    %v744 = vsel %vm68, %v733, 0.0
    %745 = vadd.xlane.f32.xlu0 %v744
    %v746 = vpop.xlane.xlu0 %745
    %v747 = vsel %vm68, %v735, 0.0
    %748 = vadd.xlane.f32.xlu0 %v747
    %v749 = vpop.xlane.xlu0 %748
    %v750 = vsel %vm68, %v737, 0.0
    %751 = vadd.xlane.f32.xlu0 %v750
    %v752 = vpop.xlane.xlu0 %751
    %v753 = vsel %vm68, %v739, 0.0
    %754 = vadd.xlane.f32.xlu0 %v753
    %v755 = vpop.xlane.xlu0 %754
    %v756 = vmul.f32 %v746, 0.03125
    %v757 = vmul.f32 %v749, 0.03125
    %v758 = vmul.f32 %v752, 0.03125
    %v759 = vmul.f32 %v755, 0.03125
    %v760 = vmul.f32 %v724, %v724
    %v761 = vmul.f32 %v725, %v725
    %v762 = vmul.f32 %v726, %v726
    %v763 = vmul.f32 %v727, %v727
    %768 = vrot.lane.b32.xlu0 %v760, 96
    %v769 = vpop.permute.xlu0 %768
    %770 = vrot.lane.b32.xlu0 %v761, 96
    %v771 = vpop.permute.xlu0 %770
    %772 = vrot.lane.b32.xlu0 %v762, 96
    %v773 = vpop.permute.xlu0 %772
    %774 = vrot.lane.b32.xlu0 %v763, 96
    %v775 = vpop.permute.xlu0 %774
    %v780 = vsel %vm68, %v769, 0.0
    %781 = vadd.xlane.f32.xlu0 %v780
    %v782 = vpop.xlane.xlu0 %781
    %v783 = vsel %vm68, %v771, 0.0
    %784 = vadd.xlane.f32.xlu0 %v783
    %v785 = vpop.xlane.xlu0 %784
    %v786 = vsel %vm68, %v773, 0.0
    %787 = vadd.xlane.f32.xlu0 %v786
    %v788 = vpop.xlane.xlu0 %787
    %v789 = vsel %vm68, %v775, 0.0
    %790 = vadd.xlane.f32.xlu0 %v789
    %v791 = vpop.xlane.xlu0 %790
    %v792 = vmul.f32 %v782, 0.03125
    %v793 = vmul.f32 %v785, 0.03125
    %v794 = vmul.f32 %v788, 0.03125
    %v795 = vmul.f32 %v791, 0.03125
    %v796 = vmul.f32 %v756, %v756
    %v797 = vmul.f32 %v757, %v757
    %v798 = vmul.f32 %v758, %v758
    %v799 = vmul.f32 %v759, %v759
    %v800 = vsub.f32 %v792, %v796
    %v801 = vsub.f32 %v793, %v797
    %v802 = vsub.f32 %v794, %v798
    %v803 = vsub.f32 %v795, %v799
    %v804 = vsub.f32 %v724, %v756
    %v805 = vsub.f32 %v725, %v757
    %v806 = vsub.f32 %v726, %v758
    %v807 = vsub.f32 %v727, %v759
    %v808 = vadd.f32 %v800, 1e-05
    %v809 = vadd.f32 %v801, 1e-05
    %v810 = vadd.f32 %v802, 1e-05
    %v811 = vadd.f32 %v803, 1e-05
    %v812 = vrsqrt.pop %v808
    %v813 = vmul.f32 %v812, %v808
    %v814 = vmul.f32 %v813, %v812
    %v815 = vmul.f32 0.5, %v814
    %v816 = vsub.f32 1.5, %v815
    %v817 = vmul.f32 %v812, %v816
    %vm818 = vweird.f32 %v808
    %vm819 = vweird.f32 %v812
    %vm820 = vmor %vm818, %vm819
    %v821 = vsel %vm820, %v812, %v817
    %v822 = vrsqrt.pop %v809
    %v823 = vmul.f32 %v822, %v809
    %v824 = vmul.f32 %v823, %v822
    %v825 = vmul.f32 0.5, %v824
    %v826 = vsub.f32 1.5, %v825
    %v827 = vmul.f32 %v822, %v826
    %vm828 = vweird.f32 %v809
    %vm829 = vweird.f32 %v822
    %vm830 = vmor %vm828, %vm829
    %v831 = vsel %vm830, %v822, %v827
    %v832 = vrsqrt.pop %v810
    %v833 = vmul.f32 %v832, %v810
    %v834 = vmul.f32 %v833, %v832
    %v835 = vmul.f32 0.5, %v834
    %v836 = vsub.f32 1.5, %v835
    %v837 = vmul.f32 %v832, %v836
    %vm838 = vweird.f32 %v810
    %vm839 = vweird.f32 %v832
    %vm840 = vmor %vm838, %vm839
    %v841 = vsel %vm840, %v832, %v837
    %v842 = vrsqrt.pop %v811
    %v843 = vmul.f32 %v842, %v811
    %v844 = vmul.f32 %v843, %v842
    %v845 = vmul.f32 0.5, %v844
    %v846 = vsub.f32 1.5, %v845
    %v847 = vmul.f32 %v842, %v846
    %vm848 = vweird.f32 %v811
    %vm849 = vweird.f32 %v842
    %vm850 = vmor %vm848, %vm849
    %v851 = vsel %vm850, %v842, %v847
    %v852 = vmul.f32 %v804, %v821
    %v853 = vmul.f32 %v805, %v831
    %v854 = vmul.f32 %v806, %v841
    %v855 = vmul.f32 %v807, %v851
    %857 = vrot.lane.b32.xlu0 %v51, 96
    %v858 = vpop.permute.xlu0 %857
    %v860 = vmul.f32 %v852, %v858
    %v861 = vmul.f32 %v853, %v858
    %v862 = vmul.f32 %v854, %v858
    %v863 = vmul.f32 %v855, %v858
    %865 = vrot.lane.b32.xlu0 %v52, 96
    %v866 = vpop.permute.xlu0 %865
    %v868 = vadd.f32 %v860, %v866
    %v869 = vadd.f32 %v861, %v866
    %v870 = vadd.f32 %v862, %v866
    %v871 = vadd.f32 %v863, %v866
    %876 = vrot.lane.b32.xlu0 %v868, 96
    %v877 = vpop.permute.xlu0 %876
    %878 = vrot.lane.b32.xlu0 %v869, 96
    %v879 = vpop.permute.xlu0 %878
    %880 = vrot.lane.b32.xlu0 %v870, 96
    %v881 = vpop.permute.xlu0 %880
    %882 = vrot.lane.b32.xlu0 %v871, 96
    %v883 = vpop.permute.xlu0 %882
    %888 = vrot.lane.b32.xlu0 %v19, 96
    %v889 = vpop.permute.xlu0 %888
    %890 = vrot.lane.b32.xlu0 %v20, 96
    %v891 = vpop.permute.xlu0 %890
    %892 = vrot.lane.b32.xlu0 %v21, 96
    %v893 = vpop.permute.xlu0 %892
    %894 = vrot.lane.b32.xlu0 %v22, 96
    %v895 = vpop.permute.xlu0 %894
    %901 = vrot.lane.b32.xlu0 %v53, 64
    %v902 = vpop.permute.xlu0 %901
    %v904 = vsel %vm68, %v877, 0
    %v906 = vsel %vm68, %v879, 0
    %v908 = vsel %vm68, %v881, 0
    %v910 = vsel %vm68, %v883, 0
    %912 = vmatpush.msra.mxu0 0.0
    %913 = vmatpush.msra.mxu0 0.0
    %914 = vmatpush.msra.mxu0 0.0
    %915 = vmatpush.msra.mxu0 0.0
    %916 = vmatpush.msra.mxu0 0.0
    %917 = vmatpush.msra.mxu0 0.0
    %918 = vmatpush.msra.mxu0 0.0
    %919 = vmatpush.msra.mxu0 0.0
    %920 = vmatpush.msra.mxu0 0.0
    %921 = vmatpush.msra.mxu0 0.0
    %922 = vmatpush.msra.mxu0 0.0
    %923 = vmatpush.msra.mxu0 0.0
    %924 = vmatpush.msra.mxu0 %v895
    %925 = vmatpush.msra.mxu0 %v893
    %926 = vmatpush.msra.mxu0 %v891
    %927 = vmatpush.msra.mxu0 %v889
    %928 = vmatmul.f32.gmra.mxu0 %v904
    %v929 = vpop.f32.mrf.mxu0
    %v930 = vadd.f32 %v902, %v929
    %931 = vmatmul.f32.gmra.mxu0 %v906
    %v932 = vpop.f32.mrf.mxu0
    %v933 = vadd.f32 %v902, %v932
    %934 = vmatmul.f32.gmra.mxu0 %v908
    %v935 = vpop.f32.mrf.mxu0
    %v936 = vadd.f32 %v902, %v935
    %937 = vmatmul.f32.gmra.mxu0 %v910
    %v938 = vpop.f32.mrf.mxu0
    %v939 = vadd.f32 %v902, %v938
    %940 = vdwg.mxu0
    %v941 = vmax.f32 %v930, 0.0
    %v942 = vmax.f32 %v933, 0.0
    %v943 = vmax.f32 %v936, 0.0
    %v944 = vmax.f32 %v939, 0.0
    %949 = vrot.lane.b32.xlu0 %v19, 32
    %v950 = vpop.permute.xlu0 %949
    %951 = vrot.lane.b32.xlu0 %v23, 32
    %v952 = vpop.permute.xlu0 %951
    %953 = vrot.lane.b32.xlu0 %v20, 32
    %v954 = vpop.permute.xlu0 %953
    %955 = vrot.lane.b32.xlu0 %v24, 32
    %v956 = vpop.permute.xlu0 %955
    %957 = vrot.lane.b32.xlu0 %v21, 32
    %v958 = vpop.permute.xlu0 %957
    %959 = vrot.lane.b32.xlu0 %v25, 32
    %v960 = vpop.permute.xlu0 %959
    %961 = vrot.lane.b32.xlu0 %v22, 32
    %v962 = vpop.permute.xlu0 %961
    %963 = vrot.lane.b32.xlu0 %v26, 32
    %v964 = vpop.permute.xlu0 %963
    %v965 = vsel %vm68, %v950, %v952
    %v966 = vsel %vm68, %v954, %v956
    %v967 = vsel %vm68, %v958, %v960
    %v968 = vsel %vm68, %v962, %v964
    %970 = vrot.lane.b32.xlu0 %v54, 64
    %v971 = vpop.permute.xlu0 %970
    %v974 = vsel %vm172, %v941, 0
    %v977 = vsel %vm172, %v942, 0
    %v980 = vsel %vm172, %v943, 0
    %v983 = vsel %vm172, %v944, 0
    %v985 = vsel %vm172, %v965, 0
    %v987 = vsel %vm172, %v966, 0
    %v989 = vsel %vm172, %v967, 0
    %v991 = vsel %vm172, %v968, 0
    %993 = vmatpush.xpose.msra.mxu0 0.0
    %994 = vmatpush.xpose.msra.mxu0 0.0
    %995 = vmatpush.xpose.msra.mxu0 0.0
    %996 = vmatpush.xpose.msra.mxu0 0.0
    %997 = vmatpush.xpose.msra.mxu0 0.0
    %998 = vmatpush.xpose.msra.mxu0 0.0
    %999 = vmatpush.xpose.msra.mxu0 0.0
    %1000 = vmatpush.xpose.msra.mxu0 0.0
    %1001 = vmatpush.xpose.msra.mxu0 0.0
    %1002 = vmatpush.xpose.msra.mxu0 0.0
    %1003 = vmatpush.xpose.msra.mxu0 0.0
    %1004 = vmatpush.xpose.msra.mxu0 0.0
    %1005 = vmatpush.xpose.msra.mxu0 %v991
    %1006 = vmatpush.xpose.msra.mxu0 %v989
    %1007 = vmatpush.xpose.msra.mxu0 %v987
    %1008 = vmatpush.xpose.msra.mxu0 %v985
    %1009 = vmatmul.f32.gmra.mxu0 %v974
    %v1010 = vpop.f32.mrf.mxu0
    %v1011 = vadd.f32 %v971, %v1010
    %1012 = vmatmul.f32.gmra.mxu0 %v977
    %v1013 = vpop.f32.mrf.mxu0
    %1014 = vmatmul.f32.gmra.mxu0 %v980
    %v1015 = vpop.f32.mrf.mxu0
    %1016 = vmatmul.f32.gmra.mxu0 %v983
    %v1017 = vpop.f32.mrf.mxu0
    %1018 = vdwg.mxu0
    %1020 = vrot.lane.b32.xlu0 %v1011, 32
    %v1021 = vpop.permute.xlu0 %1020
    %v1023 = vadd.f32 %v868, %v1021
    %1025 = vrot.lane.b32.xlu0 %v1023, 96
    %v1026 = vpop.permute.xlu0 %1025
    %v1028 = vsel %vm68, %v1026, 0.0
    %1029 = vadd.xlane.f32.xlu0 %v1028
    %v1030 = vpop.xlane.xlu0 %1029
    %v1031 = vmul.f32 %v1030, 0.03125
    %v1032 = vmul.f32 %v1023, %v1023
    %1034 = vrot.lane.b32.xlu0 %v1032, 96
    %v1035 = vpop.permute.xlu0 %1034
    %v1037 = vsel %vm68, %v1035, 0.0
    %1038 = vadd.xlane.f32.xlu0 %v1037
    %v1039 = vpop.xlane.xlu0 %1038
    %v1040 = vmul.f32 %v1039, 0.03125
    %v1041 = vmul.f32 %v1031, %v1031
    %v1042 = vsub.f32 %v1040, %v1041
    %v1043 = vsub.f32 %v1023, %v1031
    %v1044 = vadd.f32 %v1042, 1e-05
    %v1045 = vrsqrt.pop %v1044
    %v1046 = vmul.f32 %v1045, %v1044
    %v1047 = vmul.f32 %v1046, %v1045
    %v1048 = vmul.f32 0.5, %v1047
    %v1049 = vsub.f32 1.5, %v1048
    %v1050 = vmul.f32 %v1045, %v1049
    %vm1051 = vweird.f32 %v1044
    %vm1052 = vweird.f32 %v1045
    %vm1053 = vmor %vm1051, %vm1052
    %v1054 = vsel %vm1053, %v1045, %v1050
    %v1055 = vmul.f32 %v1043, %v1054
    %1057 = vrot.lane.b32.xlu0 %v55, 96
    %v1058 = vpop.permute.xlu0 %1057
    %v1060 = vmul.f32 %v1055, %v1058
    %1062 = vrot.lane.b32.xlu0 %v56, 96
    %v1063 = vpop.permute.xlu0 %1062
    %v1065 = vadd.f32 %v1060, %v1063
    %1067 = vrot.lane.b32.xlu0 %v1065, 96
    %v1068 = vpop.permute.xlu0 %1067
    %1069 = vrot.lane.b32.xlu0 %v23, 96
    %v1070 = vpop.permute.xlu0 %1069
    %1071 = vrot.lane.b32.xlu0 %v24, 96
    %v1072 = vpop.permute.xlu0 %1071
    %1073 = vrot.lane.b32.xlu0 %v25, 96
    %v1074 = vpop.permute.xlu0 %1073
    %1075 = vrot.lane.b32.xlu0 %v26, 96
    %v1076 = vpop.permute.xlu0 %1075
    %1082 = vrot.lane.b32.xlu0 %v57, 64
    %v1083 = vpop.permute.xlu0 %1082
    %v1085 = vsel %vm68, %v1068, 0
    %1087 = vmatpush.msra.mxu0 0.0
    %1088 = vmatpush.msra.mxu0 0.0
    %1089 = vmatpush.msra.mxu0 0.0
    %1090 = vmatpush.msra.mxu0 0.0
    %1091 = vmatpush.msra.mxu0 0.0
    %1092 = vmatpush.msra.mxu0 0.0
    %1093 = vmatpush.msra.mxu0 0.0
    %1094 = vmatpush.msra.mxu0 0.0
    %1095 = vmatpush.msra.mxu0 0.0
    %1096 = vmatpush.msra.mxu0 0.0
    %1097 = vmatpush.msra.mxu0 0.0
    %1098 = vmatpush.msra.mxu0 0.0
    %1099 = vmatpush.msra.mxu0 %v1076
    %1100 = vmatpush.msra.mxu0 %v1074
    %1101 = vmatpush.msra.mxu0 %v1072
    %1102 = vmatpush.msra.mxu0 %v1070
    %1103 = vmatmul.f32.gmra.mxu0 %v1085
    %v1104 = vpop.f32.mrf.mxu0
    %v1105 = vadd.f32 %v1083, %v1104
    %1106 = vdwg.mxu0
    %vm1107 = vcmask 517120
    %v1108 = vsel %vm1107, %v1105, 0.0
    %1109 = vadd.xlane.f32.xlu0 %v1108
    %v1110 = vpop.xlane.xlu0 %1109
    %v1111 = vmul.f32 %v1110, 0.015625
    %v1112 = vmul.f32 %v1105, %v1105
    %v1113 = vsel %vm1107, %v1112, 0.0
    %1114 = vadd.xlane.f32.xlu0 %v1113
    %v1115 = vpop.xlane.xlu0 %1114
    %v1116 = vmul.f32 %v1115, 0.015625
    %v1117 = vmul.f32 %v1111, %v1111
    %v1118 = vsub.f32 %v1116, %v1117
    %v1119 = vsub.f32 %v1105, %v1111
    %v1120 = vadd.f32 %v1118, 1e-05
    %v1121 = vrsqrt.pop %v1120
    %v1122 = vmul.f32 %v1121, %v1120
    %v1123 = vmul.f32 %v1122, %v1121
    %v1124 = vmul.f32 0.5, %v1123
    %v1125 = vsub.f32 1.5, %v1124
    %v1126 = vmul.f32 %v1121, %v1125
    %vm1127 = vweird.f32 %v1120
    %vm1128 = vweird.f32 %v1121
    %vm1129 = vmor %vm1127, %vm1128
    %v1130 = vsel %vm1129, %v1121, %v1126
    %v1131 = vmul.f32 %v1119, %v1130
    %1133 = vrot.lane.b32.xlu0 %v58, 64
    %v1134 = vpop.permute.xlu0 %1133
    %v1136 = vmul.f32 %v1131, %v1134
    %1138 = vrot.lane.b32.xlu0 %v59, 64
    %v1139 = vpop.permute.xlu0 %1138
    %v1141 = vadd.f32 %v1136, %v1139
    %1142 = vst.msk [vmem:[#allocation2] sm:$0x3] %vm1107, %v1141
    // Predicated region
    $region14: #{episodic_memory_encoder.1} parent=1 // pred_check
      _
    $region15: #{episodic_memory_encoder.1} parent=1 // pred_check_branch
      %1144 = sbr.rel (0) target = $region17
    $region16: #{episodic_memory_encoder.1} parent=1 // pred_region
      %1146 = vsyncadd [#allocation3], 0
      %s1148 = sshll.u32 [#allocation2], 4
      %s1149 = int_to_ptr.vmem [resolvable:$true] %s1148
      %s1150 = sshll.u32 %s3, 4
      %s1151 = int_to_ptr.hbm [resolvable:$true] %s1150
      %1153 = dma.vmem_to_hbm [thread:$0]  %s1149, 32, %s1151, [#allocation3]
    $region17: #{episodic_memory_encoder.1} parent=1 // pred_fallthru
      _
    // Predicated region
    $region18: #{episodic_memory_encoder.1} parent=1 // pred_check
      _
    $region19: #{episodic_memory_encoder.1} parent=1 // pred_check_branch
      %1155 = sbr.rel (0) target = $region21
    $region20: #{episodic_memory_encoder.1} parent=1 // pred_region
      %1157 = dma.done [#allocation3], 32
    $region21: #{episodic_memory_encoder.1} parent=1 // pred_fallthru
      _
    %1158 = vsyncpa [#allocation3], 1

</llo_original>
